<compile_context>
chip_gen: v6e
topology: v6e:2x2x1
jax: 0.10.0
libtpu: 0.0.40
codegen_flags: <defaults>
</compile_context>

<pallas_src>
import jax
import jax.numpy as jnp
from jax.experimental import pallas as pl
from jax.experimental.pallas import tpu as pltpu


def _round_up(n, m):
    return ((n + m - 1) // m) * m


# ----------------------------------------------------------------------------
# Kernel: fused 3-layer MLP on one batch tile.
#   x_ref  : (TILE_B, D)   bf16
#   w1_ref : (D, 64) f32   b1_ref : (1, 64) f32
#   w2_ref : (64, 64) f32  b2_ref : (1, 64) f32
#   w3_ref : (1, 64) f32   b3_ref : (1, 1) f32
#   o_ref  : (TILE_B, 1)   f32
# ----------------------------------------------------------------------------
def value_mlp_kernel(x_ref, w1_ref, b1_ref, w2_ref, b2_ref, w3_ref, b3_ref,
                     o_ref):
    x = x_ref[...].astype(jnp.float32)                               # (T, D)
    h1 = jnp.tanh(
        jnp.dot(x, w1_ref[...], preferred_element_type=jnp.float32)
        + b1_ref[...])                                               # (T, 64)
    h2 = jnp.tanh(
        jnp.dot(h1, w2_ref[...], preferred_element_type=jnp.float32)
        + b2_ref[...])                                               # (T, 64)
    # Final 64 -> 1 projection as VPU multiply + lane reduce (no MXU drain
    # for a 1-wide result).
    out = jnp.sum(h2 * w3_ref[...], axis=-1, keepdims=True) + b3_ref[...]
    o_ref[...] = out.astype(o_ref.dtype)                             # (T, 1)


def value_forward(x, params, tile_b=512):
    """Pallas forward pass. x: (B, state_dim) f32 -> returns (B,) f32."""
    w1, b1, w2, b2, w3, b3 = params
    B, D = x.shape
    H = w1.shape[1]  # 64

    # Tile size: >=512 rows for good pipelining on large B, but never larger
    # than the (8-row aligned) batch itself.
    tb = min(tile_b, _round_up(B, 8))
    b_padded = _round_up(B, tb)

    # Halve the dominant HBM traffic: stream x as bf16.
    x_in = x.astype(jnp.bfloat16)
    if b_padded != B:
        x_in = jnp.pad(x_in, ((0, b_padded - B), (0, 0)))

    w3_row = jnp.reshape(w3, (1, H))   # (1, 64) row for broadcast-reduce
    b3_2d = jnp.reshape(b3, (1, 1))

    grid = (b_padded // tb,)
    const = lambda i: (0, 0)  # noqa: E731  (weights stay resident)

    out = pl.pallas_call(
        value_mlp_kernel,
        out_shape=jax.ShapeDtypeStruct((b_padded, 1), jnp.float32),
        grid=grid,
        in_specs=[
            pl.BlockSpec((tb, D), lambda i: (i, 0)),   # x: streamed per tile
            pl.BlockSpec((D, H), const),               # w1 (resident)
            pl.BlockSpec((1, H), const),               # b1
            pl.BlockSpec((H, H), const),               # w2
            pl.BlockSpec((1, H), const),               # b2
            pl.BlockSpec((1, H), const),               # w3 row
            pl.BlockSpec((1, 1), const),               # b3
        ],
        out_specs=pl.BlockSpec((tb, 1), lambda i: (i, 0)),
        compiler_params=pltpu.CompilerParams(
            dimension_semantics=("parallel",)),
    )(x_in, w1, b1, w2, b2, w3_row, b3_2d)

    return out[:B, 0]   # matches torch `.squeeze(1)`


# ----------------------------------------------------------------------------
# Deterministic parameter init mirroring layer_init():
#   orthogonal_(weight, gain=sqrt(2)) ; constant_(bias, 0.0)
# Weights are built in PyTorch's (out, in) shape and transposed to (in, out)
# for the kernel's x @ W convention.
# ----------------------------------------------------------------------------
def init_value_params(key, state_dim):
    k1, k2, k3 = jax.random.split(key, 3)
    ortho = jax.nn.initializers.orthogonal(scale=jnp.sqrt(2.0))

    w1_t = ortho(k1, (64, state_dim), jnp.float32)   # torch shape (out, in)
    w2_t = ortho(k2, (64, 64), jnp.float32)
    w3_t = ortho(k3, (1, 64), jnp.float32)

    w1 = jnp.transpose(w1_t)                         # (state_dim, 64)
    w2 = jnp.transpose(w2_t)                         # (64, 64)
    w3 = jnp.transpose(w3_t)                         # (64, 1)

    b1 = jnp.zeros((1, 64), jnp.float32)
    b2 = jnp.zeros((1, 64), jnp.float32)
    b3 = jnp.zeros((1, 1), jnp.float32)
    return (w1, b1, w2, b2, w3, b3)


def value_reference(x, params):
    """Pure-JAX reference (mirrors the kernel's bf16 input rounding)."""
    w1, b1, w2, b2, w3, b3 = params
    xb = x.astype(jnp.bfloat16).astype(jnp.float32)
    h1 = jnp.tanh(jnp.dot(xb, w1, precision="highest") + b1)
    h2 = jnp.tanh(jnp.dot(h1, w2, precision="highest") + b2)
    return (jnp.dot(h2, w3, precision="highest") + b3)[:, 0]


if __name__ == "__main__":
    key = jax.random.PRNGKey(0)
    kx, kp = jax.random.split(key)

    batch, state_dim = 8, 32
    x = jax.random.normal(kx, (batch, state_dim), jnp.float32)
    params = init_value_params(kp, state_dim)

    out = jax.jit(value_forward)(x, params)
    out = jax.block_until_ready(out)

    ref = value_reference(x, params)
    assert out.shape == (batch,), out.shape
    assert jnp.allclose(out, ref, atol=1e-4, rtol=1e-4), (out, ref)

    print("KERNEL_OK")
</pallas_src>

<mosaic_0001>
module attributes {stable_mosaic.version = 11 : i64} {
  func.func @value_mlp_kernel(%arg0: i32, %arg1: memref<8x32xbf16, #tpu.memory_space<vmem>>, %arg2: memref<32x64xf32, #tpu.memory_space<vmem>>, %arg3: memref<1x64xf32, #tpu.memory_space<vmem>>, %arg4: memref<64x64xf32, #tpu.memory_space<vmem>>, %arg5: memref<1x64xf32, #tpu.memory_space<vmem>>, %arg6: memref<1x64xf32, #tpu.memory_space<vmem>>, %arg7: memref<1x1xf32, #tpu.memory_space<vmem>>, %arg8: memref<8x1xf32, #tpu.memory_space<vmem>>) attributes {dimension_semantics = [#tpu.dimension_semantics<parallel>], iteration_bounds = array<i64: 1>, scalar_prefetch = 0 : i64, scratch_operands = 0 : i64, tpu.core_type = #tpu.core_type<tc>, window_params = [{transform_indices = @transform_0, window_bounds = array<i64: 8, 32>}, {pipeline_mode = #tpu.pipeline_mode<synchronous>, transform_indices = @transform_1, window_bounds = array<i64: 32, 64>}, {pipeline_mode = #tpu.pipeline_mode<synchronous>, transform_indices = @transform_2, window_bounds = array<i64: 1, 64>}, {pipeline_mode = #tpu.pipeline_mode<synchronous>, transform_indices = @transform_3, window_bounds = array<i64: 64, 64>}, {pipeline_mode = #tpu.pipeline_mode<synchronous>, transform_indices = @transform_4, window_bounds = array<i64: 1, 64>}, {pipeline_mode = #tpu.pipeline_mode<synchronous>, transform_indices = @transform_5, window_bounds = array<i64: 1, 64>}, {pipeline_mode = #tpu.pipeline_mode<synchronous>, transform_indices = @transform_6, window_bounds = array<i64: 1, 1>}, {transform_indices = @transform_7, window_bounds = array<i64: 8, 1>}]} {
    %c0 = arith.constant 0 : index
    %c0_0 = arith.constant 0 : index
    %0 = vector.load %arg1[%c0, %c0_0] : memref<8x32xbf16, #tpu.memory_space<vmem>>, vector<8x32xbf16>
    %1 = arith.extf %0 : vector<8x32xbf16> to vector<8x32xf32>
    %c0_1 = arith.constant 0 : index
    %c0_2 = arith.constant 0 : index
    %2 = vector.load %arg2[%c0_1, %c0_2] : memref<32x64xf32, #tpu.memory_space<vmem>>, vector<32x64xf32>
    %cst = arith.constant dense<0.000000e+00> : vector<8x64xf32>
    %3 = tpu.matmul %1, %2, %cst {dimension_numbers = #tpu.dot_dimension_numbers<[1], [0], [0], [1], [0, 0, 1, 1], [], []>} : vector<8x32xf32>, vector<32x64xf32>, vector<8x64xf32> -> vector<8x64xf32>
    %c0_3 = arith.constant 0 : index
    %c0_4 = arith.constant 0 : index
    %4 = vector.load %arg3[%c0_3, %c0_4] : memref<1x64xf32, #tpu.memory_space<vmem>>, vector<1x64xf32>
    %5 = vector.broadcast %4 : vector<1x64xf32> to vector<8x64xf32>
    %6 = arith.addf %3, %5 : vector<8x64xf32>
    %7 = math.tanh %6 : vector<8x64xf32>
    %c0_5 = arith.constant 0 : index
    %c0_6 = arith.constant 0 : index
    %8 = vector.load %arg4[%c0_5, %c0_6] : memref<64x64xf32, #tpu.memory_space<vmem>>, vector<64x64xf32>
    %cst_7 = arith.constant dense<0.000000e+00> : vector<8x64xf32>
    %9 = tpu.matmul %7, %8, %cst_7 {dimension_numbers = #tpu.dot_dimension_numbers<[1], [0], [0], [1], [0, 0, 1, 1], [], []>} : vector<8x64xf32>, vector<64x64xf32>, vector<8x64xf32> -> vector<8x64xf32>
    %c0_8 = arith.constant 0 : index
    %c0_9 = arith.constant 0 : index
    %10 = vector.load %arg5[%c0_8, %c0_9] : memref<1x64xf32, #tpu.memory_space<vmem>>, vector<1x64xf32>
    %11 = vector.broadcast %10 : vector<1x64xf32> to vector<8x64xf32>
    %12 = arith.addf %9, %11 : vector<8x64xf32>
    %13 = math.tanh %12 : vector<8x64xf32>
    %c0_10 = arith.constant 0 : index
    %c0_11 = arith.constant 0 : index
    %14 = vector.load %arg6[%c0_10, %c0_11] : memref<1x64xf32, #tpu.memory_space<vmem>>, vector<1x64xf32>
    %15 = vector.broadcast %14 : vector<1x64xf32> to vector<8x64xf32>
    %16 = arith.mulf %13, %15 : vector<8x64xf32>
    %cst_12 = arith.constant dense<0.000000e+00> : vector<8xf32>
    %17 = vector.multi_reduction <add>, %16, %cst_12 [1] : vector<8x64xf32> to vector<8xf32>
    %18 = vector.shape_cast %17 : vector<8xf32> to vector<8x1xf32>
    %c0_13 = arith.constant 0 : index
    %c0_14 = arith.constant 0 : index
    %19 = vector.load %arg7[%c0_13, %c0_14] : memref<1x1xf32, #tpu.memory_space<vmem>>, vector<1x1xf32>
    %20 = vector.broadcast %19 : vector<1x1xf32> to vector<8x1xf32>
    %21 = arith.addf %18, %20 : vector<8x1xf32>
    %c0_15 = arith.constant 0 : index
    %c0_16 = arith.constant 0 : index
    %22 = vector.load %arg8[%c0_15, %c0_16] : memref<8x1xf32, #tpu.memory_space<vmem>>, vector<8x1xf32>
    tpu.vector_store %arg8[%c0_15, %c0_16], %21 {strides = array<i32>} : memref<8x1xf32, #tpu.memory_space<vmem>>, vector<8x1xf32>,
    return
  }
  func.func @transform_0(%arg0: i32) -> (i32, i32) {
    %c0_i32 = arith.constant 0 : i32
    %c0_i32_0 = arith.constant 0 : i32
    return %arg0, %c0_i32 : i32, i32
  }
  func.func @transform_1(%arg0: i32) -> (i32, i32) {
    %c0_i32 = arith.constant 0 : i32
    %c0_i32_0 = arith.constant 0 : i32
    %c0_i32_1 = arith.constant 0 : i32
    return %c0_i32, %c0_i32_0 : i32, i32
  }
  func.func @transform_2(%arg0: i32) -> (i32, i32) {
    %c0_i32 = arith.constant 0 : i32
    %c0_i32_0 = arith.constant 0 : i32
    %c0_i32_1 = arith.constant 0 : i32
    return %c0_i32, %c0_i32_0 : i32, i32
  }
  func.func @transform_3(%arg0: i32) -> (i32, i32) {
    %c0_i32 = arith.constant 0 : i32
    %c0_i32_0 = arith.constant 0 : i32
    %c0_i32_1 = arith.constant 0 : i32
    return %c0_i32, %c0_i32_0 : i32, i32
  }
  func.func @transform_4(%arg0: i32) -> (i32, i32) {
    %c0_i32 = arith.constant 0 : i32
    %c0_i32_0 = arith.constant 0 : i32
    %c0_i32_1 = arith.constant 0 : i32
    return %c0_i32, %c0_i32_0 : i32, i32
  }
  func.func @transform_5(%arg0: i32) -> (i32, i32) {
    %c0_i32 = arith.constant 0 : i32
    %c0_i32_0 = arith.constant 0 : i32
    %c0_i32_1 = arith.constant 0 : i32
    return %c0_i32, %c0_i32_0 : i32, i32
  }
  func.func @transform_6(%arg0: i32) -> (i32, i32) {
    %c0_i32 = arith.constant 0 : i32
    %c0_i32_0 = arith.constant 0 : i32
    %c0_i32_1 = arith.constant 0 : i32
    return %c0_i32, %c0_i32_0 : i32, i32
  }
  func.func @transform_7(%arg0: i32) -> (i32, i32) {
    %c0_i32 = arith.constant 0 : i32
    %c0_i32_0 = arith.constant 0 : i32
    return %arg0, %c0_i32 : i32, i32
  }
}

</mosaic_0001>

<llo_original>
// kernel: value_forward.1
$region0: #{value_forward.1}
  #allocation0 [shape = 'u32[]', space=smem, size = 0x4, offset = 0x4, fixed_abs, tag = 'smem constant byte address 0x4 - core index']
  #allocation1 [shape = 'u32[144,128]{1,0:T(1,128)}', space=vmem, size = 0x12000, scoped, tag = 'internal scratch']
  #allocation2 [shape = 'f32[1,1]{1,0:T(1,128)S(1)}', space=vmem, size = 0x200, scoped, tag = 'scoped memory for value_forward.1']
  %s0 = inlined_call_operand.vmem [shape: bf16[8,32], index: 0, kind: input, shape index: {}]
  %s1 = inlined_call_operand.hbm [shape: f32[32,64], index: 1, kind: input, shape index: {}]
  %s2 = inlined_call_operand.vmem [shape: f32[1,64], index: 2, kind: input, shape index: {}]
  %s3 = inlined_call_operand.hbm [shape: f32[64,64], index: 3, kind: input, shape index: {}]
  %s4 = inlined_call_operand.vmem [shape: f32[1,64], index: 4, kind: input, shape index: {}]
  %s5 = inlined_call_operand.vmem [shape: f32[1,64], index: 5, kind: input, shape index: {}]
  %s6 = inlined_call_operand.<no memory space> [shape: f32[1,1], index: 6, kind: input, shape index: {}]
  %s7 = inlined_call_operand.vmem [shape: f32[8,1], index: 7, kind: output, shape index: {}]
  %s8 = sld [smem:[#allocation0]]
  $region46: #{value_forward.1} parent=0
    _
  %s10 = ssub.s32 1, %s8
  %s11 = scalar_select 0, %s10, %s8
  %v12 = vstv %s6
  %13 = vst [vmem:[#allocation2] sm:$0x1] %v12
  $region1: #{value_forward.1} parent=0
    #allocation3 [shape = 'u8[16384]{0}', space=vmem, size = 0x4000, scoped, tag = 'input window, operand 1, single buffered']
    #allocation4 [shape = 's32[1]{0}', space=sflag, size = 0x4, scoped, tag = 'scoped memory for value_forward.1']
    #allocation5 [shape = 'u8[32768]{0}', space=vmem, size = 0x8000, scoped, tag = 'input window, operand 3, single buffered']
    #allocation6 [shape = 's32[1]{0}', space=sflag, size = 0x4, scoped, tag = 'scoped memory for value_forward.1']
    %14 = vsyncpa [#allocation4], 0
    %15 = vsyncpa [#allocation6], 0
    // Predicated region
    $region2: #{value_forward.1} parent=1 // pred_check
      _
    $region3: #{value_forward.1} parent=1 // pred_check_branch
      %17 = sbr.rel (0) target = $region5
    $region4: #{value_forward.1} parent=1 // pred_region
      _
    $region5: #{value_forward.1} parent=1 // pred_fallthru
      _
    // Predicated region
    $region6: #{value_forward.1} parent=1 // pred_check
      _
    $region7: #{value_forward.1} parent=1 // pred_check_branch
      %19 = sbr.rel (0) target = $region9
    $region8: #{value_forward.1} parent=1 // pred_region
      %s21 = ssub.s32 512, 512
      %22 = vsyncadd [#allocation4], %s21
      %s23 = sshll.u32 [#allocation3], 4
      %s24 = int_to_ptr.vmem [resolvable:$true] %s23
      %29 = dma.hbm_to_vmem [thread:$0]  %s1, 512, %s24, [#allocation4], 128, 128, 8
    $region9: #{value_forward.1} parent=1 // pred_fallthru
      _
    // Predicated region
    $region10: #{value_forward.1} parent=1 // pred_check
      _
    $region11: #{value_forward.1} parent=1 // pred_check_branch
      %31 = sbr.rel (0) target = $region13
    $region12: #{value_forward.1} parent=1 // pred_region
      _
    $region13: #{value_forward.1} parent=1 // pred_fallthru
      _
    // Predicated region
    $region14: #{value_forward.1} parent=1 // pred_check
      _
    $region15: #{value_forward.1} parent=1 // pred_check_branch
      %33 = sbr.rel (0) target = $region17
    $region16: #{value_forward.1} parent=1 // pred_region
      %s35 = ssub.s32 1024, 1024
      %36 = vsyncadd [#allocation6], %s35
      %s37 = sshll.u32 [#allocation5], 4
      %s38 = int_to_ptr.vmem [resolvable:$true] %s37
      %43 = dma.hbm_to_vmem [thread:$0]  %s3, 1024, %s38, [#allocation6], 128, 128, 8
    $region17: #{value_forward.1} parent=1 // pred_fallthru
      _
    // Predicated region
    $region18: #{value_forward.1} parent=1 // pred_check
      _
    $region19: #{value_forward.1} parent=1 // pred_check_branch
      %45 = sbr.rel (0) target = $region21
    $region20: #{value_forward.1} parent=1 // pred_region
      _
    $region21: #{value_forward.1} parent=1 // pred_fallthru
      _
    // Predicated region
    $region22: #{value_forward.1} parent=1 // pred_check
      _
    $region23: #{value_forward.1} parent=1 // pred_check_branch
      %47 = sbr.rel (0) target = $region25
    $region24: #{value_forward.1} parent=1 // pred_region
      _
    $region25: #{value_forward.1} parent=1 // pred_fallthru
      _
    // Predicated region
    $region26: #{value_forward.1} parent=1 // pred_check
      _
    $region27: #{value_forward.1} parent=1 // pred_check_branch
      %49 = sbr.rel (0) target = $region29
    $region28: #{value_forward.1} parent=1 // pred_region
      _
    $region29: #{value_forward.1} parent=1 // pred_fallthru
      _
    // Predicated region
    $region30: #{value_forward.1} parent=1 // pred_check
      _
    $region31: #{value_forward.1} parent=1 // pred_check_branch
      %51 = sbr.rel (0) target = $region33
    $region32: #{value_forward.1} parent=1 // pred_region
      %52 = dma.done [#allocation4], 512
    $region33: #{value_forward.1} parent=1 // pred_fallthru
      _
    // Predicated region
    $region34: #{value_forward.1} parent=1 // pred_check
      _
    $region35: #{value_forward.1} parent=1 // pred_check_branch
      %54 = sbr.rel (0) target = $region37
    $region36: #{value_forward.1} parent=1 // pred_region
      %55 = dma.done [#allocation6], 1024
    $region37: #{value_forward.1} parent=1 // pred_fallthru
      _
    %v56 = vld [vmem:[%s0] sm:$0xf]
    %v57 = vunpack.c.l.bf16 %v56
    %v58 = vld [vmem:[#allocation3] sm:$0xff]
    %v59 = vld [vmem:[#allocation3 + $0x8] sm:$0xff]
    %v60 = vld [vmem:[#allocation3 + $0x10] sm:$0xff]
    %v61 = vld [vmem:[#allocation3 + $0x18] sm:$0xff]
    %v62 = vld [vmem:[%s2] sm:$0x1]
    %v64 = vlaneseq
    %v65 = vshrl.u32 %v64, 7
    %v66 = vsub.s32 0, %v65
    %v67 = vrot.slane %v62, %v66
    %vm69 = vcmask 261120
    %v71 = vsel %vm69, %v57, 0
    %73 = vmatprep.subr.mxu0 0.0
    %74 = vmatpush1.msra.mxu0 0.0
    %75 = vmatprep.subr.mxu0 0.0
    %76 = vmatpush1.msra.mxu0 0.0
    %77 = vmatprep.subr.mxu0 0.0
    %78 = vmatpush1.msra.mxu0 0.0
    %79 = vmatprep.subr.mxu0 0.0
    %80 = vmatpush1.msra.mxu0 0.0
    %81 = vmatprep.subr.mxu0 0.0
    %82 = vmatpush1.msra.mxu0 0.0
    %83 = vmatprep.subr.mxu0 0.0
    %84 = vmatpush1.msra.mxu0 0.0
    %85 = vmatprep.subr.mxu0 0.0
    %86 = vmatpush1.msra.mxu0 0.0
    %87 = vmatprep.subr.mxu0 0.0
    %88 = vmatpush1.msra.mxu0 0.0
    %89 = vmatprep.subr.mxu0 0.0
    %90 = vmatpush1.msra.mxu0 0.0
    %91 = vmatprep.subr.mxu0 0.0
    %92 = vmatpush1.msra.mxu0 0.0
    %93 = vmatprep.subr.mxu0 0.0
    %94 = vmatpush1.msra.mxu0 0.0
    %95 = vmatprep.subr.mxu0 0.0
    %96 = vmatpush1.msra.mxu0 0.0
    %97 = vmatprep.subr.mxu0 0.0
    %98 = vmatpush1.msra.mxu0 %v61
    %99 = vmatprep.subr.mxu0 0.0
    %100 = vmatpush1.msra.mxu0 %v60
    %101 = vmatprep.subr.mxu0 0.0
    %102 = vmatpush1.msra.mxu0 %v59
    %103 = vmatprep.subr.mxu0 0.0
    %104 = vmatpush1.msra.mxu0 %v58
    %105 = vmatprep.subr.mxu0 0.0
    %106 = vmatpush2.msra.mxu0 0.0
    %107 = vmatprep.subr.mxu0 0.0
    %108 = vmatpush2.msra.mxu0 0.0
    %109 = vmatprep.subr.mxu0 0.0
    %110 = vmatpush2.msra.mxu0 0.0
    %111 = vmatprep.subr.mxu0 0.0
    %112 = vmatpush2.msra.mxu0 0.0
    %113 = vmatprep.subr.mxu0 0.0
    %114 = vmatpush2.msra.mxu0 0.0
    %115 = vmatprep.subr.mxu0 0.0
    %116 = vmatpush2.msra.mxu0 0.0
    %117 = vmatprep.subr.mxu0 0.0
    %118 = vmatpush2.msra.mxu0 0.0
    %119 = vmatprep.subr.mxu0 0.0
    %120 = vmatpush2.msra.mxu0 0.0
    %121 = vmatprep.subr.mxu0 0.0
    %122 = vmatpush2.msra.mxu0 0.0
    %123 = vmatprep.subr.mxu0 0.0
    %124 = vmatpush2.msra.mxu0 0.0
    %125 = vmatprep.subr.mxu0 0.0
    %126 = vmatpush2.msra.mxu0 0.0
    %127 = vmatprep.subr.mxu0 0.0
    %128 = vmatpush2.msra.mxu0 0.0
    %129 = vmatprep.subr.mxu0 0.0
    %130 = vmatpush2.msra.mxu0 0.0
    %131 = vmatprep.subr.mxu0 0.0
    %132 = vmatpush2.msra.mxu0 0.0
    %133 = vmatprep.subr.mxu0 0.0
    %134 = vmatpush2.msra.mxu0 0.0
    %135 = vmatprep.subr.mxu0 0.0
    %136 = vmatpush2.msra.mxu0 0.0
    %137 = vmatprep.mubr.f32.mxu0 0.0
    %138 = vmatmul.mubr.f32.gmra.mxu0 %v71
    %v139 = vpop.f32.mrf.mxu0
    %v140 = vadd.f32 %v67, %v139
    %v141 = vpop.f32.mrf.mxu0
    %142 = vdwg.mxu0
    %v143 = vtanh.pop %v140
    %v144 = vld [vmem:[#allocation5] sm:$0xff]
    %v145 = vld [vmem:[#allocation5 + $0x8] sm:$0xff]
    %v146 = vld [vmem:[#allocation5 + $0x10] sm:$0xff]
    %v147 = vld [vmem:[#allocation5 + $0x18] sm:$0xff]
    %v148 = vld [vmem:[#allocation5 + $0x20] sm:$0xff]
    %v149 = vld [vmem:[#allocation5 + $0x28] sm:$0xff]
    %v150 = vld [vmem:[#allocation5 + $0x30] sm:$0xff]
    %v151 = vld [vmem:[#allocation5 + $0x38] sm:$0xff]
    %v152 = vld [vmem:[%s4] sm:$0x1]
    %v154 = vlaneseq
    %v155 = vshrl.u32 %v154, 7
    %v156 = vsub.s32 0, %v155
    %v157 = vrot.slane %v152, %v156
    %vm159 = vcmask 523264
    %v161 = vsel %vm159, %v143, 0
    %163 = vmatprep.subr.mxu0 0.0
    %164 = vmatpush1.msra.mxu0 0.0
    %165 = vmatprep.subr.mxu0 0.0
    %166 = vmatpush1.msra.mxu0 0.0
    %167 = vmatprep.subr.mxu0 0.0
    %168 = vmatpush1.msra.mxu0 0.0
    %169 = vmatprep.subr.mxu0 0.0
    %170 = vmatpush1.msra.mxu0 0.0
    %171 = vmatprep.subr.mxu0 0.0
    %172 = vmatpush1.msra.mxu0 0.0
    %173 = vmatprep.subr.mxu0 0.0
    %174 = vmatpush1.msra.mxu0 0.0
    %175 = vmatprep.subr.mxu0 0.0
    %176 = vmatpush1.msra.mxu0 0.0
    %177 = vmatprep.subr.mxu0 0.0
    %178 = vmatpush1.msra.mxu0 0.0
    %179 = vmatprep.subr.mxu0 0.0
    %180 = vmatpush1.msra.mxu0 %v151
    %181 = vmatprep.subr.mxu0 0.0
    %182 = vmatpush1.msra.mxu0 %v150
    %183 = vmatprep.subr.mxu0 0.0
    %184 = vmatpush1.msra.mxu0 %v149
    %185 = vmatprep.subr.mxu0 0.0
    %186 = vmatpush1.msra.mxu0 %v148
    %187 = vmatprep.subr.mxu0 0.0
    %188 = vmatpush1.msra.mxu0 %v147
    %189 = vmatprep.subr.mxu0 0.0
    %190 = vmatpush1.msra.mxu0 %v146
    %191 = vmatprep.subr.mxu0 0.0
    %192 = vmatpush1.msra.mxu0 %v145
    %193 = vmatprep.subr.mxu0 0.0
    %194 = vmatpush1.msra.mxu0 %v144
    %195 = vmatprep.subr.mxu0 0.0
    %196 = vmatpush2.msra.mxu0 0.0
    %197 = vmatprep.subr.mxu0 0.0
    %198 = vmatpush2.msra.mxu0 0.0
    %199 = vmatprep.subr.mxu0 0.0
    %200 = vmatpush2.msra.mxu0 0.0
    %201 = vmatprep.subr.mxu0 0.0
    %202 = vmatpush2.msra.mxu0 0.0
    %203 = vmatprep.subr.mxu0 0.0
    %204 = vmatpush2.msra.mxu0 0.0
    %205 = vmatprep.subr.mxu0 0.0
    %206 = vmatpush2.msra.mxu0 0.0
    %207 = vmatprep.subr.mxu0 0.0
    %208 = vmatpush2.msra.mxu0 0.0
    %209 = vmatprep.subr.mxu0 0.0
    %210 = vmatpush2.msra.mxu0 0.0
    %211 = vmatprep.subr.mxu0 0.0
    %212 = vmatpush2.msra.mxu0 0.0
    %213 = vmatprep.subr.mxu0 0.0
    %214 = vmatpush2.msra.mxu0 0.0
    %215 = vmatprep.subr.mxu0 0.0
    %216 = vmatpush2.msra.mxu0 0.0
    %217 = vmatprep.subr.mxu0 0.0
    %218 = vmatpush2.msra.mxu0 0.0
    %219 = vmatprep.subr.mxu0 0.0
    %220 = vmatpush2.msra.mxu0 0.0
    %221 = vmatprep.subr.mxu0 0.0
    %222 = vmatpush2.msra.mxu0 0.0
    %223 = vmatprep.subr.mxu0 0.0
    %224 = vmatpush2.msra.mxu0 0.0
    %225 = vmatprep.subr.mxu0 0.0
    %226 = vmatpush2.msra.mxu0 0.0
    %227 = vmatprep.mubr.f32.mxu0 0.0
    %228 = vmatmul.mubr.f32.gmra.mxu0 %v161
    %v229 = vpop.f32.mrf.mxu0
    %v230 = vadd.f32 %v157, %v229
    %v231 = vpop.f32.mrf.mxu0
    %232 = vdwg.mxu0
    %v233 = vtanh.pop %v230
    %v234 = vld [vmem:[%s5] sm:$0x1]
    %v236 = vlaneseq
    %v237 = vshrl.u32 %v236, 7
    %v238 = vsub.s32 0, %v237
    %v239 = vrot.slane %v234, %v238
    %v241 = vmul.f32 %v233, %v239
    %v242 = vsel %vm159, %v241, 0.0
    %243 = vadd.xlane.f32.xlu0 %v242
    %v244 = vpop.xlane.xlu0 %243
    %v245 = vld [vmem:[#allocation2] sm:$0x1]
    %v247 = vlaneseq
    %v248 = vshrl.u32 %v247, 7
    %v249 = vsub.s32 0, %v248
    %v250 = vrot.slane %v245, %v249
    %v252 = vadd.f32 %v244, %v250
    %vm253 = vcmask 7168
    %254 = vst.msk [vmem:[%s7] sm:$0xff] %vm253, %v252
    // Predicated region
    $region38: #{value_forward.1} parent=1 // pred_check
      _
    $region39: #{value_forward.1} parent=1 // pred_check_branch
      %256 = sbr.rel (0) target = $region41
    $region40: #{value_forward.1} parent=1 // pred_region
      _
    $region41: #{value_forward.1} parent=1 // pred_fallthru
      _
    // Predicated region
    $region42: #{value_forward.1} parent=1 // pred_check
      _
    $region43: #{value_forward.1} parent=1 // pred_check_branch
      %258 = sbr.rel (0) target = $region45
    $region44: #{value_forward.1} parent=1 // pred_region
      _
    $region45: #{value_forward.1} parent=1 // pred_fallthru
      _
    %259 = vsyncpa [#allocation4], 1
    %260 = vsyncpa [#allocation6], 1

</llo_original>
